<compile_context>
chip_gen: v6e
topology: v6e:2x2x1
jax: 0.10.0
libtpu: 0.0.40
codegen_flags: <defaults>
</compile_context>

<pallas_src>
import jax
import jax.numpy as jnp
from jax.experimental import pallas as pl
from jax.experimental.pallas import tpu as pltpu


def _contrast_kernel(x_ref, ax_ref, ay_ref, mx_ref, my_ref, o_ref):
    # x_ref : (C, 2*TH, 2*TW)  zero-padded NCHW input tile (lane axis = width)
    # ax/ay : (TH, 2*TH)       vertical (row-pair) combiners for conv_x / conv_y
    # mx/my : (2*TW, TW)       horizontal (column-pair) combiners
    # o_ref : (Co, TH, TW)     NCHW output tile (identical across Co)
    xs = jnp.sum(x_ref[...], axis=0)  # channel sum (weights identical per channel)

    tx = jnp.dot(ax_ref[...], xs, preferred_element_type=jnp.float32)  # (TH, 2*TW)
    ty = jnp.dot(ay_ref[...], xs, preferred_element_type=jnp.float32)  # (TH, 2*TW)
    cx = jnp.dot(tx, mx_ref[...], preferred_element_type=jnp.float32)  # (TH, TW)
    cy = jnp.dot(ty, my_ref[...], preferred_element_type=jnp.float32)  # (TH, TW)

    res = jnp.sqrt(jnp.abs(cx) + jnp.abs(cy))                           # (TH, TW)

    co, th, tw = o_ref.shape
    o_ref[...] = jnp.broadcast_to(res[None, :, :], (co, th, tw)).astype(o_ref.dtype)


def _make_row_combiners(th, dtype=jnp.float32):
    # Ax[i, 2i] = 1, Ax[i, 2i+1] =  2   (conv_x vertical factor [1,  2])
    # Ay[i, 2i] = 1, Ay[i, 2i+1] = -1   (conv_y vertical factor [1, -1])
    rows = jnp.arange(th)
    cols = jnp.arange(2 * th)
    even = (cols[None, :] == 2 * rows[:, None]).astype(dtype)
    odd = (cols[None, :] == 2 * rows[:, None] + 1).astype(dtype)
    return even + 2.0 * odd, even - odd


def _make_col_combiners(tw, dtype=jnp.float32):
    # Mx[2j, j] = -1, Mx[2j+1, j] = 1   (conv_x horizontal factor [-1, 1])
    # My[2j, j] =  2, My[2j+1, j] = 1   (conv_y horizontal factor [ 2, 1])
    r = jnp.arange(2 * tw)
    c1 = jnp.arange(tw)
    e = (r[:, None] == 2 * c1[None, :]).astype(dtype)
    o = (r[:, None] == 2 * c1[None, :] + 1).astype(dtype)
    return -e + o, 2.0 * e + o


def _round_up(x, m):
    return ((x + m - 1) // m) * m


def _pick_tiles(ho, wo, c, budget_bytes=2 << 20):
    """Pick (row_tile, col_tile) over the OUTPUT grid.

    Column tile: full width when small (<=256), else 128 lanes so the
    column-pair selection matmul stays O(256) MACs per output element.
    Row tile: capped at 128 (keeps the (TH, 2*TH) row combiner cheap) and by a
    VMEM budget for the (C, 2*TH, 2*TW) input block; rounded to a multiple of
    8 so tiled blocks satisfy the sublane constraint.
    """
    tw = wo if wo <= 256 else 128
    max_th = min(max(budget_bytes // (c * 2 * (2 * tw) * 4), 8), 128)
    if ho <= max_th:
        th = ho  # single row tile -> full-extent block, no sublane constraint
    else:
        n_row = -(-ho // max_th)
        th = _round_up(-(-ho // n_row), 8)
    return th, tw


def contrast(x, out_channels, *, row_tile=None, col_tile=None):
    """Pallas-backed Contrast forward. x: (N, C, H, W) -> (N, Co, Ho, Wo) f32."""
    x = x.astype(jnp.float32)
    n, c, h, w = x.shape
    ho, wo = (h + 1) // 2, (w + 1) // 2

    th, tw = _pick_tiles(ho, wo, c)
    if row_tile is not None:
        th = row_tile
    if col_tile is not None:
        tw = col_tile
    n_row, n_col = pl.cdiv(ho, th), pl.cdiv(wo, tw)
    ho_pad, wo_pad = n_row * th, n_col * tw
    hp, wp = 2 * ho_pad, 2 * wo_pad

    # Zero pad right/bottom (ZeroPad2d((0,1,0,1)) semantics) + tile rounding.
    # For even H/W with divisible tiles this pad is a no-op and is elided.
    xp = jnp.pad(x, ((0, 0), (0, 0), (0, hp - h), (0, wp - w)))

    ax, ay = _make_row_combiners(th)
    mx, my = _make_col_combiners(tw)

    out = pl.pallas_call(
        _contrast_kernel,
        out_shape=jax.ShapeDtypeStruct((n, out_channels, ho_pad, wo_pad), jnp.float32),
        grid_spec=pltpu.PrefetchScalarGridSpec(
            num_scalar_prefetch=0,
            grid=(n, n_row, n_col),
            in_specs=[
                # Batch dim squeezed out of the kernel view; width on lanes.
                pl.BlockSpec((None, c, 2 * th, 2 * tw), lambda b, r, q: (b, 0, r, q)),
                pl.BlockSpec((th, 2 * th), lambda b, r, q: (0, 0)),
                pl.BlockSpec((th, 2 * th), lambda b, r, q: (0, 0)),
                pl.BlockSpec((2 * tw, tw), lambda b, r, q: (0, 0)),
                pl.BlockSpec((2 * tw, tw), lambda b, r, q: (0, 0)),
            ],
            out_specs=pl.BlockSpec(
                (None, out_channels, th, tw), lambda b, r, q: (b, 0, r, q)
            ),
        ),
        compiler_params=pltpu.CompilerParams(
            dimension_semantics=("parallel", "parallel", "parallel"),
        ),
    )(xp, ax, ay, mx, my)

    if ho_pad != ho or wo_pad != wo:
        out = out[:, :, :ho, :wo]
    return out


def _reference(x, out_channels):
    # Pure-JAX reference mirroring the PyTorch forward (sanity check).
    x = x.astype(jnp.float32)
    n, c, h, w = x.shape
    xp = jnp.pad(x, ((0, 0), (0, 0), (0, 1), (0, 1)))
    wx = jnp.broadcast_to(jnp.array([[-1.0, 1.0], [-2.0, 2.0]]), (out_channels, c, 2, 2))
    wy = jnp.broadcast_to(jnp.array([[2.0, 1.0], [-2.0, -1.0]]), (out_channels, c, 2, 2))
    dn = jax.lax.conv_dimension_numbers(xp.shape, wx.shape, ("NCHW", "OIHW", "NCHW"))
    cx = jax.lax.conv_general_dilated(xp, wx, (2, 2), "VALID", dimension_numbers=dn)
    cy = jax.lax.conv_general_dilated(xp, wy, (2, 2), "VALID", dimension_numbers=dn)
    return jnp.sqrt(jnp.abs(cx) + jnp.abs(cy))


def _check(key, shape, co):
    x = jax.random.normal(key, shape, dtype=jnp.float32)
    out = jax.block_until_ready(contrast(x, co))
    ref = _reference(x, co)
    assert out.shape == ref.shape, (out.shape, ref.shape)
    assert jnp.allclose(out, ref, atol=1e-4, rtol=1e-4), f"mismatch vs reference {shape}"
    return out


if __name__ == "__main__":
    key = jax.random.PRNGKey(0)
    k1, k2, k3, k4 = jax.random.split(key, 4)

    _check(k1, (2, 4, 16, 16), 8)     # primary small case (single tile path)
    _check(k2, (1, 3, 15, 13), 6)     # odd H/W -> ZeroPad2d bottom/right path
    _check(k3, (1, 2, 258, 40), 4)    # multiple row tiles
    _check(k4, (1, 2, 8, 600), 3)     # multiple column tiles (lane tiling)

    print("KERNEL_OK")
</pallas_src>

<mosaic_0001>
module attributes {stable_mosaic.version = 11 : i64} {
  func.func @_contrast_kernel(%arg0: i32, %arg1: i32, %arg2: i32, %arg3: memref<1x4x16x16xf32, #tpu.memory_space<vmem>>, %arg4: memref<8x16xf32, #tpu.memory_space<vmem>>, %arg5: memref<8x16xf32, #tpu.memory_space<vmem>>, %arg6: memref<16x8xf32, #tpu.memory_space<vmem>>, %arg7: memref<16x8xf32, #tpu.memory_space<vmem>>, %arg8: memref<1x8x8x8xf32, #tpu.memory_space<vmem>>) attributes {dimension_semantics = [#tpu.dimension_semantics<parallel>, #tpu.dimension_semantics<parallel>, #tpu.dimension_semantics<parallel>], iteration_bounds = array<i64: 2, 1, 1>, scalar_prefetch = 0 : i64, scratch_operands = 0 : i64, tpu.core_type = #tpu.core_type<tc>, window_params = [{transform_indices = @transform_0, window_bounds = array<i64: 1, 4, 16, 16>}, {pipeline_mode = #tpu.pipeline_mode<synchronous>, transform_indices = @transform_1, window_bounds = array<i64: 8, 16>}, {pipeline_mode = #tpu.pipeline_mode<synchronous>, transform_indices = @transform_2, window_bounds = array<i64: 8, 16>}, {pipeline_mode = #tpu.pipeline_mode<synchronous>, transform_indices = @transform_3, window_bounds = array<i64: 16, 8>}, {pipeline_mode = #tpu.pipeline_mode<synchronous>, transform_indices = @transform_4, window_bounds = array<i64: 16, 8>}, {transform_indices = @transform_5, window_bounds = array<i64: 1, 8, 8, 8>}]} {
    %c0 = arith.constant 0 : index
    %c0_0 = arith.constant 0 : index
    %c0_1 = arith.constant 0 : index
    %c0_2 = arith.constant 0 : index
    %0 = vector.load %arg3[%c0, %c0_0, %c0_1, %c0_2] : memref<1x4x16x16xf32, #tpu.memory_space<vmem>>, vector<1x4x16x16xf32>
    %1 = vector.shape_cast %0 : vector<1x4x16x16xf32> to vector<4x16x16xf32>
    %cst = arith.constant dense<0.000000e+00> : vector<16x16xf32>
    %2 = vector.multi_reduction <add>, %1, %cst [0] : vector<4x16x16xf32> to vector<16x16xf32>
    %c0_3 = arith.constant 0 : index
    %c0_4 = arith.constant 0 : index
    %3 = vector.load %arg4[%c0_3, %c0_4] : memref<8x16xf32, #tpu.memory_space<vmem>>, vector<8x16xf32>
    %cst_5 = arith.constant dense<0.000000e+00> : vector<8x16xf32>
    %4 = tpu.matmul %3, %2, %cst_5 {dimension_numbers = #tpu.dot_dimension_numbers<[1], [0], [0], [1], [0, 0, 1, 1], [], []>} : vector<8x16xf32>, vector<16x16xf32>, vector<8x16xf32> -> vector<8x16xf32>
    %c0_6 = arith.constant 0 : index
    %c0_7 = arith.constant 0 : index
    %5 = vector.load %arg5[%c0_6, %c0_7] : memref<8x16xf32, #tpu.memory_space<vmem>>, vector<8x16xf32>
    %cst_8 = arith.constant dense<0.000000e+00> : vector<8x16xf32>
    %6 = tpu.matmul %5, %2, %cst_8 {dimension_numbers = #tpu.dot_dimension_numbers<[1], [0], [0], [1], [0, 0, 1, 1], [], []>} : vector<8x16xf32>, vector<16x16xf32>, vector<8x16xf32> -> vector<8x16xf32>
    %c0_9 = arith.constant 0 : index
    %c0_10 = arith.constant 0 : index
    %7 = vector.load %arg6[%c0_9, %c0_10] : memref<16x8xf32, #tpu.memory_space<vmem>>, vector<16x8xf32>
    %cst_11 = arith.constant dense<0.000000e+00> : vector<8x8xf32>
    %8 = tpu.matmul %4, %7, %cst_11 {dimension_numbers = #tpu.dot_dimension_numbers<[1], [0], [0], [1], [0, 0, 1, 1], [], []>} : vector<8x16xf32>, vector<16x8xf32>, vector<8x8xf32> -> vector<8x8xf32>
    %c0_12 = arith.constant 0 : index
    %c0_13 = arith.constant 0 : index
    %9 = vector.load %arg7[%c0_12, %c0_13] : memref<16x8xf32, #tpu.memory_space<vmem>>, vector<16x8xf32>
    %cst_14 = arith.constant dense<0.000000e+00> : vector<8x8xf32>
    %10 = tpu.matmul %6, %9, %cst_14 {dimension_numbers = #tpu.dot_dimension_numbers<[1], [0], [0], [1], [0, 0, 1, 1], [], []>} : vector<8x16xf32>, vector<16x8xf32>, vector<8x8xf32> -> vector<8x8xf32>
    %11 = math.absf %8 : vector<8x8xf32>
    %12 = math.absf %10 : vector<8x8xf32>
    %13 = arith.addf %11, %12 : vector<8x8xf32>
    %14 = math.sqrt %13 : vector<8x8xf32>
    %15 = vector.shape_cast %14 : vector<8x8xf32> to vector<1x8x8xf32>
    %16 = vector.shape_cast %15 : vector<1x8x8xf32> to vector<1x8x8xf32>
    %17 = vector.broadcast %16 : vector<1x8x8xf32> to vector<8x8x8xf32>
    %c0_15 = arith.constant 0 : index
    %c0_16 = arith.constant 0 : index
    %c0_17 = arith.constant 0 : index
    %c0_18 = arith.constant 0 : index
    %18 = vector.load %arg8[%c0_15, %c0_16, %c0_17, %c0_18] : memref<1x8x8x8xf32, #tpu.memory_space<vmem>>, vector<1x8x8x8xf32>
    %19 = vector.shape_cast %18 : vector<1x8x8x8xf32> to vector<8x8x8xf32>
    %20 = vector.shape_cast %17 : vector<8x8x8xf32> to vector<1x8x8x8xf32>
    tpu.vector_store %arg8[%c0_15, %c0_16, %c0_17, %c0_18], %20 {strides = array<i32>} : memref<1x8x8x8xf32, #tpu.memory_space<vmem>>, vector<1x8x8x8xf32>,
    return
  }
  func.func @transform_0(%arg0: i32, %arg1: i32, %arg2: i32) -> (i32, i32, i32, i32) {
    %c0_i32 = arith.constant 0 : i32
    %c0_i32_0 = arith.constant 0 : i32
    return %arg0, %c0_i32, %arg1, %arg2 : i32, i32, i32, i32
  }
  func.func @transform_1(%arg0: i32, %arg1: i32, %arg2: i32) -> (i32, i32) {
    %c0_i32 = arith.constant 0 : i32
    %c0_i32_0 = arith.constant 0 : i32
    %c0_i32_1 = arith.constant 0 : i32
    return %c0_i32, %c0_i32_0 : i32, i32
  }
  func.func @transform_2(%arg0: i32, %arg1: i32, %arg2: i32) -> (i32, i32) {
    %c0_i32 = arith.constant 0 : i32
    %c0_i32_0 = arith.constant 0 : i32
    %c0_i32_1 = arith.constant 0 : i32
    return %c0_i32, %c0_i32_0 : i32, i32
  }
  func.func @transform_3(%arg0: i32, %arg1: i32, %arg2: i32) -> (i32, i32) {
    %c0_i32 = arith.constant 0 : i32
    %c0_i32_0 = arith.constant 0 : i32
    %c0_i32_1 = arith.constant 0 : i32
    return %c0_i32, %c0_i32_0 : i32, i32
  }
  func.func @transform_4(%arg0: i32, %arg1: i32, %arg2: i32) -> (i32, i32) {
    %c0_i32 = arith.constant 0 : i32
    %c0_i32_0 = arith.constant 0 : i32
    %c0_i32_1 = arith.constant 0 : i32
    return %c0_i32, %c0_i32_0 : i32, i32
  }
  func.func @transform_5(%arg0: i32, %arg1: i32, %arg2: i32) -> (i32, i32, i32, i32) {
    %c0_i32 = arith.constant 0 : i32
    %c0_i32_0 = arith.constant 0 : i32
    return %arg0, %c0_i32, %arg1, %arg2 : i32, i32, i32, i32
  }
}

</mosaic_0001>

<llo_original>
// kernel: tpu_custom_call.1
$region0: #{tpu_custom_call.1}
  #allocation0 [shape = 'u32[]', space=smem, size = 0x4, offset = 0x4, fixed_abs, tag = 'smem constant byte address 0x4 - core index']
  #allocation1 [shape = 'u32[144,128]{1,0:T(1,128)}', space=vmem, size = 0x12000, scoped, tag = 'internal scratch']
  %s0 = inlined_call_operand.hbm [shape: f32[2,4,16,16], index: 0, kind: input, shape index: {}]
  %s1 = inlined_call_operand.vmem [shape: f32[8,16], index: 1, kind: input, shape index: {}]
  %s2 = inlined_call_operand.vmem [shape: f32[8,16], index: 2, kind: input, shape index: {}]
  %s3 = inlined_call_operand.vmem [shape: f32[16,8], index: 3, kind: input, shape index: {}]
  %s4 = inlined_call_operand.vmem [shape: f32[16,8], index: 4, kind: input, shape index: {}]
  %s5 = inlined_call_operand.hbm [shape: f32[2,8,8,8], index: 5, kind: output, shape index: {}]
  %s6 = sld [smem:[#allocation0]]
  $region57: #{tpu_custom_call.1} parent=0
    _
  %s8 = ssub.s32 1, %s6
  %s9 = scalar_select 0, %s8, %s6
  $region1: #{tpu_custom_call.1} parent=0
    #allocation2 [shape = 'u8[65536]{0}', space=vmem, size = 0x10000, scoped, tag = 'input window, operand 0']
    #allocation3 [shape = 's32[2]{0}', space=sflag, size = 0x8, scoped, tag = 'scoped memory for tpu_custom_call.1']
    #allocation4 [shape = 's32[2]{0}', space=sflag, size = 0x8, scoped, tag = 'scoped memory for tpu_custom_call.1']
    #allocation5 [shape = 'u8[65536]{0}', space=vmem, size = 0x10000, scoped, tag = 'output window, operand 0']
    %10 = vsyncpa [#allocation3], 0
    %s11 = scalar_lea.sflag [#allocation3], 1
    %12 = vsyncpa %s11, 0
    %13 = vsyncpa [#allocation4], 0
    %s14 = scalar_lea.sflag [#allocation4], 1
    %15 = vsyncpa %s14, 0
    loop: start=0, step=1, limit=4
    $region2: #{tpu_custom_call.1} parent=1 // loop_pre_header
      _
    $region3: #{tpu_custom_call.1} parent=1 // loop_header
      %s17 = sphi 0, %s21
      %p18 = scmp.ge.s32.totalorder %s17, 4
      %s24 = sphi 0, %s43
      %s25 = sphi 0, %s39
      %s26 = sphi 0, %s35
      %s27 = sphi 0, %s24
      %s28 = sphi 0, %s25
      %s29 = sphi 0, %s26
      %s30 = sphi 0, %s27
      %s31 = sphi 0, %s28
      %s32 = sphi 0, %s29
      %s50 = sphi 0, %s52
      %s53 = sphi 0, %s50
      %s54 = sphi 0, %s53
      %s70 = sphi 0, %s54
      %s74 = sphi 0, %s74
      %s76 = sphi 0, %s74
      %s77 = sphi 0, %s76
      %s91 = sphi 0, %s77
      %s95 = sphi 0, %s95
      %s97 = sphi 0, %s95
      %s98 = sphi 0, %s97
      %s112 = sphi 0, %s98
      %s116 = sphi 0, %s116
      %s118 = sphi 0, %s116
      %s119 = sphi 0, %s118
      %s133 = sphi 0, %s119
      %s137 = sphi 0, %s137
      %s139 = sphi 0, %s137
      %s140 = sphi 0, %s139
      %s154 = sphi 0, %s140
      %s164 = sphi 0, %s166
      %s167 = sphi 0, %s164
      %s168 = sphi 0, %s167
      %s184 = sphi 0, %s168
    $region4: #{tpu_custom_call.1} parent=1 // loop_header_branch
      %20 = sbr.rel (%p18) target = $region8
    $region5: #{tpu_custom_call.1} parent=1 // loop_body
      %s22 = ssub.s32 %s17, 1
      %s23 = ssub.s32 %s17, 2
      %s33 = sadd.s32 1, %s26
      %p34 = scmp.ge.s32.totalorder %s33, 1
      %s35 = scalar_select %p34, 0, %s33
      %s36 = sadd.s32 1, %s25
      %s37 = scalar_select %p34, %s36, %s25
      %p38 = scmp.ge.s32.totalorder %s37, 1
      %s39 = scalar_select %p38, 0, %s37
      %s40 = sadd.s32 1, %s24
      %s41 = scalar_select %p38, %s40, %s24
      %p42 = scmp.ge.s32.totalorder %s41, 2
      %s43 = scalar_select %p42, 0, %s41
      %s44 = ssub.s32 %s24, %s43
      %s45 = ssub.s32 %s25, %s39
      %s46 = sor.u32 %s44, %s45
      %s47 = ssub.s32 %s26, %s35
      %s48 = sor.u32 %s46, %s47
      %p49 = scmp.eq.s32.totalorder %s48, 0
      %s51 = sadd.s32 %s50, 1
      %s52 = scalar_select %p49, %s50, %s51
      %p55 = pneg %p49
      %p56 = scmp.eq.s32.totalorder %s17, 1
      %p57 = por %p55, %p56
      %p58 = scmp.ne.s32.totalorder %s50, %s53
      %p59 = scmp.eq.s32.totalorder %s17, 0
      %p60 = por %p58, %p59
      %p61 = scmp.ne.s32.totalorder %s50, %s53
      %p62 = scmp.eq.s32.totalorder %s22, 1
      %p63 = por %p61, %p62
      %p64 = scmp.ne.s32.totalorder %s53, %s54
      %p65 = scmp.eq.s32.totalorder %s22, 0
      %p66 = por %p64, %p65
      %p67 = scmp.ne.s32.totalorder %s53, %s54
      %p68 = scmp.eq.s32.totalorder %s23, 1
      %p69 = por %p67, %p68
      %p71 = scmp.ne.s32.totalorder %s54, %s70
      %p72 = scmp.eq.s32.totalorder %s23, 0
      %p73 = por %p71, %p72
      %s75 = sadd.s32 %s74, 1
      %p78 = scmp.eq.s32.totalorder %s17, 1
      %p79 = scmp.ne.s32.totalorder %s74, %s76
      %p80 = scmp.eq.s32.totalorder %s17, 0
      %p81 = por %p79, %p80
      %p82 = scmp.ne.s32.totalorder %s74, %s76
      %p83 = scmp.eq.s32.totalorder %s22, 1
      %p84 = por %p82, %p83
      %p85 = scmp.ne.s32.totalorder %s76, %s77
      %p86 = scmp.eq.s32.totalorder %s22, 0
      %p87 = por %p85, %p86
      %p88 = scmp.ne.s32.totalorder %s76, %s77
      %p89 = scmp.eq.s32.totalorder %s23, 1
      %p90 = por %p88, %p89
      %p92 = scmp.ne.s32.totalorder %s77, %s91
      %p93 = scmp.eq.s32.totalorder %s23, 0
      %p94 = por %p92, %p93
      %s96 = sadd.s32 %s95, 1
      %p99 = scmp.eq.s32.totalorder %s17, 1
      %p100 = scmp.ne.s32.totalorder %s95, %s97
      %p101 = scmp.eq.s32.totalorder %s17, 0
      %p102 = por %p100, %p101
      %p103 = scmp.ne.s32.totalorder %s95, %s97
      %p104 = scmp.eq.s32.totalorder %s22, 1
      %p105 = por %p103, %p104
      %p106 = scmp.ne.s32.totalorder %s97, %s98
      %p107 = scmp.eq.s32.totalorder %s22, 0
      %p108 = por %p106, %p107
      %p109 = scmp.ne.s32.totalorder %s97, %s98
      %p110 = scmp.eq.s32.totalorder %s23, 1
      %p111 = por %p109, %p110
      %p113 = scmp.ne.s32.totalorder %s98, %s112
      %p114 = scmp.eq.s32.totalorder %s23, 0
      %p115 = por %p113, %p114
      %s117 = sadd.s32 %s116, 1
      %p120 = scmp.eq.s32.totalorder %s17, 1
      %p121 = scmp.ne.s32.totalorder %s116, %s118
      %p122 = scmp.eq.s32.totalorder %s17, 0
      %p123 = por %p121, %p122
      %p124 = scmp.ne.s32.totalorder %s116, %s118
      %p125 = scmp.eq.s32.totalorder %s22, 1
      %p126 = por %p124, %p125
      %p127 = scmp.ne.s32.totalorder %s118, %s119
      %p128 = scmp.eq.s32.totalorder %s22, 0
      %p129 = por %p127, %p128
      %p130 = scmp.ne.s32.totalorder %s118, %s119
      %p131 = scmp.eq.s32.totalorder %s23, 1
      %p132 = por %p130, %p131
      %p134 = scmp.ne.s32.totalorder %s119, %s133
      %p135 = scmp.eq.s32.totalorder %s23, 0
      %p136 = por %p134, %p135
      %s138 = sadd.s32 %s137, 1
      %p141 = scmp.eq.s32.totalorder %s17, 1
      %p142 = scmp.ne.s32.totalorder %s137, %s139
      %p143 = scmp.eq.s32.totalorder %s17, 0
      %p144 = por %p142, %p143
      %p145 = scmp.ne.s32.totalorder %s137, %s139
      %p146 = scmp.eq.s32.totalorder %s22, 1
      %p147 = por %p145, %p146
      %p148 = scmp.ne.s32.totalorder %s139, %s140
      %p149 = scmp.eq.s32.totalorder %s22, 0
      %p150 = por %p148, %p149
      %p151 = scmp.ne.s32.totalorder %s139, %s140
      %p152 = scmp.eq.s32.totalorder %s23, 1
      %p153 = por %p151, %p152
      %p155 = scmp.ne.s32.totalorder %s140, %s154
      %p156 = scmp.eq.s32.totalorder %s23, 0
      %p157 = por %p155, %p156
      %s158 = ssub.s32 %s24, %s43
      %s159 = ssub.s32 %s25, %s39
      %s160 = sor.u32 %s158, %s159
      %s161 = ssub.s32 %s26, %s35
      %s162 = sor.u32 %s160, %s161
      %p163 = scmp.eq.s32.totalorder %s162, 0
      %s165 = sadd.s32 %s164, 1
      %s166 = scalar_select %p163, %s164, %s165
      %p169 = pneg %p163
      %p170 = scmp.eq.s32.totalorder %s17, 1
      %p171 = por %p169, %p170
      %p172 = scmp.ne.s32.totalorder %s164, %s167
      %p173 = scmp.eq.s32.totalorder %s17, 0
      %p174 = por %p172, %p173
      %p175 = scmp.ne.s32.totalorder %s164, %s167
      %p176 = scmp.eq.s32.totalorder %s22, 1
      %p177 = por %p175, %p176
      %p178 = scmp.ne.s32.totalorder %s167, %s168
      %p179 = scmp.eq.s32.totalorder %s22, 0
      %p180 = por %p178, %p179
      %p181 = scmp.ne.s32.totalorder %s167, %s168
      %p182 = scmp.eq.s32.totalorder %s23, 1
      %p183 = por %p181, %p182
      %p185 = scmp.ne.s32.totalorder %s168, %s184
      %p186 = scmp.eq.s32.totalorder %s23, 0
      %p187 = por %p185, %p186
      %p188 = scmp.le.s32.totalorder 1, %s17
      %p189 = scmp.lt.s32.totalorder %s17, 3
      %p190 = pnand %p188, %p189
      %p191 = pneg %p190
      // Predicated region
      $region9: #{tpu_custom_call.1} parent=5 // pred_check
        _
      $region10: #{tpu_custom_call.1} parent=5 // pred_check_branch
        %193 = sbr.rel (%p190) target = $region12
      $region11: #{tpu_custom_call.1} parent=5 // pred_region
        %s194 = ssub.s32 %s17, 1
        // Predicated region
        $region13: #{tpu_custom_call.1} parent=11 // pred_check
          %p195 = pneg %p87
        $region14: #{tpu_custom_call.1} parent=11 // pred_check_branch
          %197 = sbr.rel (%p195) target = $region16
        $region15: #{tpu_custom_call.1} parent=11 // pred_region
          _
        $region16: #{tpu_custom_call.1} parent=11 // pred_fallthru
          _
        // Predicated region
        $region17: #{tpu_custom_call.1} parent=11 // pred_check
          %p198 = pneg %p108
        $region18: #{tpu_custom_call.1} parent=11 // pred_check_branch
          %200 = sbr.rel (%p198) target = $region20
        $region19: #{tpu_custom_call.1} parent=11 // pred_region
          _
        $region20: #{tpu_custom_call.1} parent=11 // pred_fallthru
          _
        // Predicated region
        $region21: #{tpu_custom_call.1} parent=11 // pred_check
          %p201 = pneg %p129
        $region22: #{tpu_custom_call.1} parent=11 // pred_check_branch
          %203 = sbr.rel (%p201) target = $region24
        $region23: #{tpu_custom_call.1} parent=11 // pred_region
          _
        $region24: #{tpu_custom_call.1} parent=11 // pred_fallthru
          _
        // Predicated region
        $region25: #{tpu_custom_call.1} parent=11 // pred_check
          %p204 = pneg %p150
        $region26: #{tpu_custom_call.1} parent=11 // pred_check_branch
          %206 = sbr.rel (%p204) target = $region28
        $region27: #{tpu_custom_call.1} parent=11 // pred_region
          _
        $region28: #{tpu_custom_call.1} parent=11 // pred_fallthru
          _
      $region12: #{tpu_custom_call.1} parent=5 // pred_fallthru
        _
      %p207 = scmp.lt.s32.totalorder %s17, 2
      // Predicated region
      $region29: #{tpu_custom_call.1} parent=5 // pred_check
        %p208 = pneg %p207
      $region30: #{tpu_custom_call.1} parent=5 // pred_check_branch
        %210 = sbr.rel (%p208) target = $region32
      $region31: #{tpu_custom_call.1} parent=5 // pred_region
        // Predicated region
        $region33: #{tpu_custom_call.1} parent=31 // pred_check
          %p211 = pneg %p60
        $region34: #{tpu_custom_call.1} parent=31 // pred_check_branch
          %213 = sbr.rel (%p211) target = $region36
        $region35: #{tpu_custom_call.1} parent=31 // pred_region
          %s214 = sand.u32 %s50, 1
          %s215 = scalar_lea.sflag [#allocation3], %s214
          %s216 = sand.u32 %s50, 1
          %s217 = smul.addr %s216, 64
          %s218 = scalar_lea.vmem [#allocation2], %s217
          %s219 = smul.u32 2, %s25
          %s221 = ssub.s32 1024, 1024
          %222 = vsyncadd %s215, %s221
          %s223 = sadd.s32 %s26, %s219
          %s224 = smul.addr %s24, 8
          %s225 = sadd.s32 %s223, %s224
          %s226 = smul.addr %s225, 128
          %s227 = scalar_lea.hbm %s0, %s226
          %s228 = sshll.u32 %s218, 4
          %s229 = int_to_ptr.vmem [resolvable:$true] %s228
          %234 = dma.hbm_to_vmem [thread:$0]  %s227, 1024, %s229, %s215, 128, 128, 8
        $region36: #{tpu_custom_call.1} parent=31 // pred_fallthru
          _
      $region32: #{tpu_custom_call.1} parent=5 // pred_fallthru
        _
      %p235 = scmp.le.s32.totalorder 1, %s17
      %p236 = scmp.lt.s32.totalorder %s17, 3
      %p237 = pnand %p235, %p236
      %p238 = pneg %p237
      // Predicated region
      $region37: #{tpu_custom_call.1} parent=5 // pred_check
        _
      $region38: #{tpu_custom_call.1} parent=5 // pred_check_branch
        %240 = sbr.rel (%p237) target = $region40
      $region39: #{tpu_custom_call.1} parent=5 // pred_region
        %s241 = ssub.s32 %s17, 1
        %s242 = sand.u32 %s53, 1
        %s243 = scalar_lea.sflag [#allocation3], %s242
        %s244 = sand.u32 %s53, 1
        %s245 = smul.addr %s244, 64
        %s246 = scalar_lea.vmem [#allocation2], %s245
        // Predicated region
        $region41: #{tpu_custom_call.1} parent=39 // pred_check
          %p247 = pneg %p66
        $region42: #{tpu_custom_call.1} parent=39 // pred_check_branch
          %249 = sbr.rel (%p247) target = $region44
        $region43: #{tpu_custom_call.1} parent=39 // pred_region
          %250 = dma.done %s243, 1024
        $region44: #{tpu_custom_call.1} parent=39 // pred_fallthru
          _
        %s251 = sand.u32 %s53, 1
        %s252 = scalar_lea.sflag [#allocation3], %s251
        %s253 = sand.u32 %s53, 1
        %s254 = smul.addr %s253, 64
        %s255 = scalar_lea.vmem [#allocation2], %s254
        %p256 = pneg %p66
        %p257 = pneg %p63
        %p258 = pneg %p87
        %p259 = pneg %p84
        %p260 = pneg %p108
        %p261 = pneg %p105
        %p262 = pneg %p129
        %p263 = pneg %p126
        %p264 = pneg %p150
        %p265 = pneg %p147
        %p266 = pneg %p180
        %p267 = pneg %p177
        %s268 = sand.u32 %s167, 1
        %s269 = scalar_lea.sflag [#allocation4], %s268
        %s270 = sand.u32 %s167, 1
        %s271 = smul.addr %s270, 64
        %s272 = scalar_lea.vmem [#allocation5], %s271
        %s273 = smul.u32 2, %s28
        %v274 = vld [vmem:[%s246] sm:$0xff]
        %v275 = vld [vmem:[%s246 + $0x8] sm:$0xff]
        %v276 = vld [vmem:[%s246 + $0x10] sm:$0xff]
        %v277 = vld [vmem:[%s246 + $0x18] sm:$0xff]
        %v278 = vld [vmem:[%s246 + $0x20] sm:$0xff]
        %v279 = vld [vmem:[%s246 + $0x28] sm:$0xff]
        %v280 = vld [vmem:[%s246 + $0x30] sm:$0xff]
        %v281 = vld [vmem:[%s246 + $0x38] sm:$0xff]
        %vm282 = vcmask 130048
        %v283 = vsel %vm282, %v274, 0.0
        %v284 = vsel %vm282, %v276, 0.0
        %v285 = vadd.f32 %v283, %v284
        %v286 = vsel %vm282, %v278, 0.0
        %v287 = vadd.f32 %v285, %v286
        %v288 = vsel %vm282, %v280, 0.0
        %v289 = vadd.f32 %v287, %v288
        %v290 = vsel %vm282, %v275, 0.0
        %v291 = vsel %vm282, %v277, 0.0
        %v292 = vadd.f32 %v290, %v291
        %v293 = vsel %vm282, %v279, 0.0
        %v294 = vadd.f32 %v292, %v293
        %v295 = vsel %vm282, %v281, 0.0
        %v296 = vadd.f32 %v294, %v295
        %v297 = vld [vmem:[%s1] sm:$0xff]
        %v299 = vsel %vm282, %v297, 0
        %301 = vmatprep.subr.mxu0 0.0
        %302 = vmatpush1.msra.mxu0 0.0
        %303 = vmatprep.subr.mxu0 0.0
        %304 = vmatpush1.msra.mxu0 0.0
        %305 = vmatprep.subr.mxu0 0.0
        %306 = vmatpush1.msra.mxu0 0.0
        %307 = vmatprep.subr.mxu0 0.0
        %308 = vmatpush1.msra.mxu0 0.0
        %309 = vmatprep.subr.mxu0 0.0
        %310 = vmatpush1.msra.mxu0 0.0
        %311 = vmatprep.subr.mxu0 0.0
        %312 = vmatpush1.msra.mxu0 0.0
        %313 = vmatprep.subr.mxu0 0.0
        %314 = vmatpush1.msra.mxu0 0.0
        %315 = vmatprep.subr.mxu0 0.0
        %316 = vmatpush1.msra.mxu0 0.0
        %317 = vmatprep.subr.mxu0 0.0
        %318 = vmatpush1.msra.mxu0 0.0
        %319 = vmatprep.subr.mxu0 0.0
        %320 = vmatpush1.msra.mxu0 0.0
        %321 = vmatprep.subr.mxu0 0.0
        %322 = vmatpush1.msra.mxu0 0.0
        %323 = vmatprep.subr.mxu0 0.0
        %324 = vmatpush1.msra.mxu0 0.0
        %325 = vmatprep.subr.mxu0 0.0
        %326 = vmatpush1.msra.mxu0 0.0
        %327 = vmatprep.subr.mxu0 0.0
        %328 = vmatpush1.msra.mxu0 0.0
        %329 = vmatprep.subr.mxu0 0.0
        %330 = vmatpush1.msra.mxu0 %v296
        %331 = vmatprep.subr.mxu0 0.0
        %332 = vmatpush1.msra.mxu0 %v289
        %333 = vmatprep.subr.mxu0 0.0
        %334 = vmatpush2.msra.mxu0 0.0
        %335 = vmatprep.subr.mxu0 0.0
        %336 = vmatpush2.msra.mxu0 0.0
        %337 = vmatprep.subr.mxu0 0.0
        %338 = vmatpush2.msra.mxu0 0.0
        %339 = vmatprep.subr.mxu0 0.0
        %340 = vmatpush2.msra.mxu0 0.0
        %341 = vmatprep.subr.mxu0 0.0
        %342 = vmatpush2.msra.mxu0 0.0
        %343 = vmatprep.subr.mxu0 0.0
        %344 = vmatpush2.msra.mxu0 0.0
        %345 = vmatprep.subr.mxu0 0.0
        %346 = vmatpush2.msra.mxu0 0.0
        %347 = vmatprep.subr.mxu0 0.0
        %348 = vmatpush2.msra.mxu0 0.0
        %349 = vmatprep.subr.mxu0 0.0
        %350 = vmatpush2.msra.mxu0 0.0
        %351 = vmatprep.subr.mxu0 0.0
        %352 = vmatpush2.msra.mxu0 0.0
        %353 = vmatprep.subr.mxu0 0.0
        %354 = vmatpush2.msra.mxu0 0.0
        %355 = vmatprep.subr.mxu0 0.0
        %356 = vmatpush2.msra.mxu0 0.0
        %357 = vmatprep.subr.mxu0 0.0
        %358 = vmatpush2.msra.mxu0 0.0
        %359 = vmatprep.subr.mxu0 0.0
        %360 = vmatpush2.msra.mxu0 0.0
        %361 = vmatprep.subr.mxu0 0.0
        %362 = vmatpush2.msra.mxu0 0.0
        %363 = vmatprep.subr.mxu0 0.0
        %364 = vmatpush2.msra.mxu0 0.0
        %365 = vmatprep.mubr.f32.mxu0 0.0
        %366 = vmatmul.mubr.f32.gmra.mxu0 %v299
        %v367 = vpop.f32.mrf.mxu0
        %v368 = vadd.f32 0.0, %v367
        %v369 = vpop.f32.mrf.mxu0
        %370 = vdwg.mxu0
        %v371 = vld [vmem:[%s2] sm:$0xff]
        %v373 = vsel %vm282, %v371, 0
        %375 = vmatprep.subr.mxu0 0.0
        %376 = vmatpush1.msra.mxu0 0.0
        %377 = vmatprep.subr.mxu0 0.0
        %378 = vmatpush1.msra.mxu0 0.0
        %379 = vmatprep.subr.mxu0 0.0
        %380 = vmatpush1.msra.mxu0 0.0
        %381 = vmatprep.subr.mxu0 0.0
        %382 = vmatpush1.msra.mxu0 0.0
        %383 = vmatprep.subr.mxu0 0.0
        %384 = vmatpush1.msra.mxu0 0.0
        %385 = vmatprep.subr.mxu0 0.0
        %386 = vmatpush1.msra.mxu0 0.0
        %387 = vmatprep.subr.mxu0 0.0
        %388 = vmatpush1.msra.mxu0 0.0
        %389 = vmatprep.subr.mxu0 0.0
        %390 = vmatpush1.msra.mxu0 0.0
        %391 = vmatprep.subr.mxu0 0.0
        %392 = vmatpush1.msra.mxu0 0.0
        %393 = vmatprep.subr.mxu0 0.0
        %394 = vmatpush1.msra.mxu0 0.0
        %395 = vmatprep.subr.mxu0 0.0
        %396 = vmatpush1.msra.mxu0 0.0
        %397 = vmatprep.subr.mxu0 0.0
        %398 = vmatpush1.msra.mxu0 0.0
        %399 = vmatprep.subr.mxu0 0.0
        %400 = vmatpush1.msra.mxu0 0.0
        %401 = vmatprep.subr.mxu0 0.0
        %402 = vmatpush1.msra.mxu0 0.0
        %403 = vmatprep.subr.mxu0 0.0
        %404 = vmatpush1.msra.mxu0 %v296
        %405 = vmatprep.subr.mxu0 0.0
        %406 = vmatpush1.msra.mxu0 %v289
        %407 = vmatprep.subr.mxu0 0.0
        %408 = vmatpush2.msra.mxu0 0.0
        %409 = vmatprep.subr.mxu0 0.0
        %410 = vmatpush2.msra.mxu0 0.0
        %411 = vmatprep.subr.mxu0 0.0
        %412 = vmatpush2.msra.mxu0 0.0
        %413 = vmatprep.subr.mxu0 0.0
        %414 = vmatpush2.msra.mxu0 0.0
        %415 = vmatprep.subr.mxu0 0.0
        %416 = vmatpush2.msra.mxu0 0.0
        %417 = vmatprep.subr.mxu0 0.0
        %418 = vmatpush2.msra.mxu0 0.0
        %419 = vmatprep.subr.mxu0 0.0
        %420 = vmatpush2.msra.mxu0 0.0
        %421 = vmatprep.subr.mxu0 0.0
        %422 = vmatpush2.msra.mxu0 0.0
        %423 = vmatprep.subr.mxu0 0.0
        %424 = vmatpush2.msra.mxu0 0.0
        %425 = vmatprep.subr.mxu0 0.0
        %426 = vmatpush2.msra.mxu0 0.0
        %427 = vmatprep.subr.mxu0 0.0
        %428 = vmatpush2.msra.mxu0 0.0
        %429 = vmatprep.subr.mxu0 0.0
        %430 = vmatpush2.msra.mxu0 0.0
        %431 = vmatprep.subr.mxu0 0.0
        %432 = vmatpush2.msra.mxu0 0.0
        %433 = vmatprep.subr.mxu0 0.0
        %434 = vmatpush2.msra.mxu0 0.0
        %435 = vmatprep.subr.mxu0 0.0
        %436 = vmatpush2.msra.mxu0 0.0
        %437 = vmatprep.subr.mxu0 0.0
        %438 = vmatpush2.msra.mxu0 0.0
        %439 = vmatprep.mubr.f32.mxu0 0.0
        %440 = vmatmul.mubr.f32.gmra.mxu0 %v373
        %v441 = vpop.f32.mrf.mxu0
        %v442 = vadd.f32 0.0, %v441
        %v443 = vpop.f32.mrf.mxu0
        %444 = vdwg.mxu0
        %v445 = vld [vmem:[%s3] sm:$0xff]
        %v446 = vld [vmem:[%s3 + $0x8] sm:$0xff]
        %v448 = vsel %vm282, %v368, 0
        %450 = vmatprep.subr.mxu0 0.0
        %451 = vmatpush1.msra.mxu0 0.0
        %452 = vmatprep.subr.mxu0 0.0
        %453 = vmatpush1.msra.mxu0 0.0
        %454 = vmatprep.subr.mxu0 0.0
        %455 = vmatpush1.msra.mxu0 0.0
        %456 = vmatprep.subr.mxu0 0.0
        %457 = vmatpush1.msra.mxu0 0.0
        %458 = vmatprep.subr.mxu0 0.0
        %459 = vmatpush1.msra.mxu0 0.0
        %460 = vmatprep.subr.mxu0 0.0
        %461 = vmatpush1.msra.mxu0 0.0
        %462 = vmatprep.subr.mxu0 0.0
        %463 = vmatpush1.msra.mxu0 0.0
        %464 = vmatprep.subr.mxu0 0.0
        %465 = vmatpush1.msra.mxu0 0.0
        %466 = vmatprep.subr.mxu0 0.0
        %467 = vmatpush1.msra.mxu0 0.0
        %468 = vmatprep.subr.mxu0 0.0
        %469 = vmatpush1.msra.mxu0 0.0
        %470 = vmatprep.subr.mxu0 0.0
        %471 = vmatpush1.msra.mxu0 0.0
        %472 = vmatprep.subr.mxu0 0.0
        %473 = vmatpush1.msra.mxu0 0.0
        %474 = vmatprep.subr.mxu0 0.0
        %475 = vmatpush1.msra.mxu0 0.0
        %476 = vmatprep.subr.mxu0 0.0
        %477 = vmatpush1.msra.mxu0 0.0
        %478 = vmatprep.subr.mxu0 0.0
        %479 = vmatpush1.msra.mxu0 %v446
        %480 = vmatprep.subr.mxu0 0.0
        %481 = vmatpush1.msra.mxu0 %v445
        %482 = vmatprep.subr.mxu0 0.0
        %483 = vmatpush2.msra.mxu0 0.0
        %484 = vmatprep.subr.mxu0 0.0
        %485 = vmatpush2.msra.mxu0 0.0
        %486 = vmatprep.subr.mxu0 0.0
        %487 = vmatpush2.msra.mxu0 0.0
        %488 = vmatprep.subr.mxu0 0.0
        %489 = vmatpush2.msra.mxu0 0.0
        %490 = vmatprep.subr.mxu0 0.0
        %491 = vmatpush2.msra.mxu0 0.0
        %492 = vmatprep.subr.mxu0 0.0
        %493 = vmatpush2.msra.mxu0 0.0
        %494 = vmatprep.subr.mxu0 0.0
        %495 = vmatpush2.msra.mxu0 0.0
        %496 = vmatprep.subr.mxu0 0.0
        %497 = vmatpush2.msra.mxu0 0.0
        %498 = vmatprep.subr.mxu0 0.0
        %499 = vmatpush2.msra.mxu0 0.0
        %500 = vmatprep.subr.mxu0 0.0
        %501 = vmatpush2.msra.mxu0 0.0
        %502 = vmatprep.subr.mxu0 0.0
        %503 = vmatpush2.msra.mxu0 0.0
        %504 = vmatprep.subr.mxu0 0.0
        %505 = vmatpush2.msra.mxu0 0.0
        %506 = vmatprep.subr.mxu0 0.0
        %507 = vmatpush2.msra.mxu0 0.0
        %508 = vmatprep.subr.mxu0 0.0
        %509 = vmatpush2.msra.mxu0 0.0
        %510 = vmatprep.subr.mxu0 0.0
        %511 = vmatpush2.msra.mxu0 0.0
        %512 = vmatprep.subr.mxu0 0.0
        %513 = vmatpush2.msra.mxu0 0.0
        %514 = vmatprep.mubr.f32.mxu0 0.0
        %515 = vmatmul.mubr.f32.gmra.mxu0 %v448
        %v516 = vpop.f32.mrf.mxu0
        %v517 = vadd.f32 0.0, %v516
        %v518 = vpop.f32.mrf.mxu0
        %519 = vdwg.mxu0
        %v520 = vld [vmem:[%s4] sm:$0xff]
        %v521 = vld [vmem:[%s4 + $0x8] sm:$0xff]
        %v523 = vsel %vm282, %v442, 0
        %525 = vmatprep.subr.mxu0 0.0
        %526 = vmatpush1.msra.mxu0 0.0
        %527 = vmatprep.subr.mxu0 0.0
        %528 = vmatpush1.msra.mxu0 0.0
        %529 = vmatprep.subr.mxu0 0.0
        %530 = vmatpush1.msra.mxu0 0.0
        %531 = vmatprep.subr.mxu0 0.0
        %532 = vmatpush1.msra.mxu0 0.0
        %533 = vmatprep.subr.mxu0 0.0
        %534 = vmatpush1.msra.mxu0 0.0
        %535 = vmatprep.subr.mxu0 0.0
        %536 = vmatpush1.msra.mxu0 0.0
        %537 = vmatprep.subr.mxu0 0.0
        %538 = vmatpush1.msra.mxu0 0.0
        %539 = vmatprep.subr.mxu0 0.0
        %540 = vmatpush1.msra.mxu0 0.0
        %541 = vmatprep.subr.mxu0 0.0
        %542 = vmatpush1.msra.mxu0 0.0
        %543 = vmatprep.subr.mxu0 0.0
        %544 = vmatpush1.msra.mxu0 0.0
        %545 = vmatprep.subr.mxu0 0.0
        %546 = vmatpush1.msra.mxu0 0.0
        %547 = vmatprep.subr.mxu0 0.0
        %548 = vmatpush1.msra.mxu0 0.0
        %549 = vmatprep.subr.mxu0 0.0
        %550 = vmatpush1.msra.mxu0 0.0
        %551 = vmatprep.subr.mxu0 0.0
        %552 = vmatpush1.msra.mxu0 0.0
        %553 = vmatprep.subr.mxu0 0.0
        %554 = vmatpush1.msra.mxu0 %v521
        %555 = vmatprep.subr.mxu0 0.0
        %556 = vmatpush1.msra.mxu0 %v520
        %557 = vmatprep.subr.mxu0 0.0
        %558 = vmatpush2.msra.mxu0 0.0
        %559 = vmatprep.subr.mxu0 0.0
        %560 = vmatpush2.msra.mxu0 0.0
        %561 = vmatprep.subr.mxu0 0.0
        %562 = vmatpush2.msra.mxu0 0.0
        %563 = vmatprep.subr.mxu0 0.0
        %564 = vmatpush2.msra.mxu0 0.0
        %565 = vmatprep.subr.mxu0 0.0
        %566 = vmatpush2.msra.mxu0 0.0
        %567 = vmatprep.subr.mxu0 0.0
        %568 = vmatpush2.msra.mxu0 0.0
        %569 = vmatprep.subr.mxu0 0.0
        %570 = vmatpush2.msra.mxu0 0.0
        %571 = vmatprep.subr.mxu0 0.0
        %572 = vmatpush2.msra.mxu0 0.0
        %573 = vmatprep.subr.mxu0 0.0
        %574 = vmatpush2.msra.mxu0 0.0
        %575 = vmatprep.subr.mxu0 0.0
        %576 = vmatpush2.msra.mxu0 0.0
        %577 = vmatprep.subr.mxu0 0.0
        %578 = vmatpush2.msra.mxu0 0.0
        %579 = vmatprep.subr.mxu0 0.0
        %580 = vmatpush2.msra.mxu0 0.0
        %581 = vmatprep.subr.mxu0 0.0
        %582 = vmatpush2.msra.mxu0 0.0
        %583 = vmatprep.subr.mxu0 0.0
        %584 = vmatpush2.msra.mxu0 0.0
        %585 = vmatprep.subr.mxu0 0.0
        %586 = vmatpush2.msra.mxu0 0.0
        %587 = vmatprep.subr.mxu0 0.0
        %588 = vmatpush2.msra.mxu0 0.0
        %589 = vmatprep.mubr.f32.mxu0 0.0
        %590 = vmatmul.mubr.f32.gmra.mxu0 %v523
        %v591 = vpop.f32.mrf.mxu0
        %v592 = vadd.f32 0.0, %v591
        %v593 = vpop.f32.mrf.mxu0
        %594 = vdwg.mxu0
        %v595 = vand.u32 2147483647, %v517
        %v596 = vand.u32 2147483647, %v592
        %v597 = vadd.f32 %v595, %v596
        %v598 = vrsqrt.pop %v597
        %v599 = vmul.f32 %v597, %v598
        %vm600 = vcmp.eq.f32.partialorder %v597, inf
        %v601 = vsel %vm600, %v597, %v599
        %vm602 = vcmp.eq.f32.partialorder %v597, 0.0
        %v603 = vand.u32 %v597, 2147483648
        %v604 = vsel %vm602, %v603, %v601
        %vm605 = vcmask 64512
        %606 = vst.msk [vmem:[%s272] sm:$0xff] %vm605, %v604
        %607 = vst.msk [vmem:[%s272 + $0x8] sm:$0xff] %vm605, %v604
        %608 = vst.msk [vmem:[%s272 + $0x10] sm:$0xff] %vm605, %v604
        %609 = vst.msk [vmem:[%s272 + $0x18] sm:$0xff] %vm605, %v604
        %610 = vst.msk [vmem:[%s272 + $0x20] sm:$0xff] %vm605, %v604
        %611 = vst.msk [vmem:[%s272 + $0x28] sm:$0xff] %vm605, %v604
        %612 = vst.msk [vmem:[%s272 + $0x30] sm:$0xff] %vm605, %v604
        %613 = vst.msk [vmem:[%s272 + $0x38] sm:$0xff] %vm605, %v604
        %s614 = sand.u32 %s167, 1
        %s615 = scalar_lea.sflag [#allocation4], %s614
        %s616 = sand.u32 %s167, 1
        %s617 = smul.addr %s616, 64
        %s618 = scalar_lea.vmem [#allocation5], %s617
        // Predicated region
        $region45: #{tpu_custom_call.1} parent=39 // pred_check
          %p619 = pneg %p177
        $region46: #{tpu_custom_call.1} parent=39 // pred_check_branch
          %621 = sbr.rel (%p619) target = $region48
        $region47: #{tpu_custom_call.1} parent=39 // pred_region
          %s623 = ssub.s32 1024, 1024
          %624 = vsyncadd %s615, %s623
          %s625 = sadd.s32 %s29, %s28
          %s626 = smul.addr %s27, 8
          %s627 = sadd.s32 %s625, %s626
          %s628 = smul.addr %s627, 128
          %s629 = scalar_lea.hbm %s5, %s628
          %s630 = sshll.u32 %s618, 4
          %s631 = int_to_ptr.vmem [resolvable:$true] %s630
          %636 = dma.vmem_to_hbm [thread:$0]  %s631, 1024, %s629, %s615, 128, 128, 8
        $region48: #{tpu_custom_call.1} parent=39 // pred_fallthru
          _
      $region40: #{tpu_custom_call.1} parent=5 // pred_fallthru
        _
      %p637 = scmp.le.s32.totalorder 2, %s17
      // Predicated region
      $region49: #{tpu_custom_call.1} parent=5 // pred_check
        %p638 = pneg %p637
      $region50: #{tpu_custom_call.1} parent=5 // pred_check_branch
        %640 = sbr.rel (%p638) target = $region52
      $region51: #{tpu_custom_call.1} parent=5 // pred_region
        %s641 = ssub.s32 %s17, 2
        // Predicated region
        $region53: #{tpu_custom_call.1} parent=51 // pred_check
          %p642 = pneg %p183
        $region54: #{tpu_custom_call.1} parent=51 // pred_check_branch
          %644 = sbr.rel (%p642) target = $region56
        $region55: #{tpu_custom_call.1} parent=51 // pred_region
          %s645 = sand.u32 %s168, 1
          %s646 = scalar_lea.sflag [#allocation4], %s645
          %s647 = sand.u32 %s168, 1
          %s648 = smul.addr %s647, 64
          %s649 = scalar_lea.vmem [#allocation5], %s648
          %650 = dma.done %s646, 1024
        $region56: #{tpu_custom_call.1} parent=51 // pred_fallthru
          _
      $region52: #{tpu_custom_call.1} parent=5 // pred_fallthru
        _
    $region6: #{tpu_custom_call.1} parent=1 // loop_footer
      %s21 = sadd.s32 1, %s17
    $region7: #{tpu_custom_call.1} parent=1 // loop_footer_branch
      %16 = sbr.rel target = $region3
    $region8: #{tpu_custom_call.1} parent=1 // loop_exit
      _
    %651 = vsyncpa [#allocation3], 1
    %s652 = scalar_lea.sflag [#allocation3], 1
    %653 = vsyncpa %s652, 1
    %654 = vsyncpa [#allocation4], 1
    %s655 = scalar_lea.sflag [#allocation4], 1
    %656 = vsyncpa %s655, 1

</llo_original>
